<compile_context>
chip_gen: v6e
topology: v6e:2x2x1
jax: 0.10.0
libtpu: 0.0.40
codegen_flags: <defaults>
</compile_context>

<pallas_src>
import jax
import jax.numpy as jnp
from jax.experimental import pallas as pl
from jax.experimental.pallas import tpu as pltpu


def _predictor_kernel(x_ref, wp_ref, bp_ref, wc_ref, bc_ref,
                      logits_ref, idx_ref):
    # x_ref:      [TB, H]    CLS-token hidden states (bf16 or f32)
    # wp_ref:     [H, H]     pooler weight, [in, out] layout
    # bp_ref:     [1, H]     pooler bias (f32)
    # wc_ref:     [H, Lp]    classifier weight, [in, out], labels padded to 128
    # bc_ref:     [1, Lp]    classifier bias (f32); padded labels hold -1e30
    # logits_ref: [TB, Lp]   f32
    # idx_ref:    [TB, 128]  int32 (argmax broadcast across lanes)

    # BertPooler: dense + tanh on the CLS token. MXU accumulates in f32; the
    # bias add and tanh stay in f32.
    pooled = jnp.tanh(
        jnp.dot(x_ref[...], wp_ref[...], preferred_element_type=jnp.float32)
        + bp_ref[...])

    # Classifier head. Cast the small pooled activation down to the weight
    # dtype so the second matmul runs at full bf16 MXU rate.
    logits = (
        jnp.dot(pooled.astype(wc_ref.dtype), wc_ref[...],
                preferred_element_type=jnp.float32)
        + bc_ref[...])
    logits_ref[...] = logits

    # test_forward: argmax(softmax(logits)) == argmax(logits), so softmax is
    # dropped. First-occurrence tie-break via iota + masked min. Padded label
    # columns carry -1e30 bias and can never win.
    lp = logits.shape[-1]
    ids = jax.lax.broadcasted_iota(jnp.int32, logits.shape, 1)
    lmax = jnp.max(logits, axis=-1, keepdims=True)
    idx = jnp.min(jnp.where(logits == lmax, ids, lp), axis=-1, keepdims=True)
    idx_ref[...] = jnp.broadcast_to(idx, idx_ref.shape).astype(jnp.int32)


def prepare_predictor_params(w_pool, b_pool, w_cls, b_cls,
                             param_dtype=jnp.bfloat16):
    """One-time parameter prep (do at model-init time, NOT per forward call).

    PyTorch nn.Linear weights are [out, in]; the kernel wants [in, out] so it
    can run plain x @ W on the MXU. The label dim is padded to a multiple of
    128 for lane-dense matmul output and unmasked stores.
    """
    H = w_pool.shape[1]
    L = w_cls.shape[0]
    L_pad = ((L + 127) // 128) * 128
    wp_t = jnp.transpose(w_pool).astype(param_dtype)                 # [H, H]
    bp = b_pool.reshape(1, H).astype(jnp.float32)                    # [1, H]
    wc_t = jnp.pad(jnp.transpose(w_cls).astype(param_dtype),
                   ((0, 0), (0, L_pad - L)))                         # [H, Lp]
    bc = jnp.pad(b_cls.astype(jnp.float32), (0, L_pad - L),
                 constant_values=-1e30).reshape(1, L_pad)            # [1, Lp]
    return {"wp_t": wp_t, "bp": bp, "wc_t": wc_t, "bc": bc, "labels_num": L}


def single_stream_mm_predictor(hidden_states, params, *, training=False):
    """Forward of SingleStreamMultiModalPredictor.

    hidden_states: [B, S, H] (or a list of them; the last one is used).
    params: dict from prepare_predictor_params.
    Returns {"U_LOGITS": [B, L] f32} and, when not training, "OUTPUT": [B] i32.
    """
    if isinstance(hidden_states, (list, tuple)):
        hidden_states = hidden_states[-1]
    B, S, H = hidden_states.shape
    wp_t, bp, wc_t, bc = (params["wp_t"], params["bp"],
                          params["wc_t"], params["bc"])
    L = params["labels_num"]
    L_pad = wc_t.shape[1]

    # CLS-token slice, dtype preserved (no upcast pass): a tiny [B, H] copy.
    x_cls = hidden_states[:, 0, :]

    # Batch tile: sublane-friendly divisor of B (multiple of 8 when possible),
    # so the grid pipelines x/logits DMA under compute and the "parallel"
    # axis can be sharded across TensorCores on v7x.
    if B % 8 == 0:
        TB = next(t for t in (128, 64, 32, 16, 8) if B % t == 0)
    else:
        TB = B
    grid = (B // TB,)

    def whole(shape):
        return pl.BlockSpec(shape, lambda i, _s=shape: (0,) * len(_s))

    logits_pad, idx = pl.pallas_call(
        _predictor_kernel,
        out_shape=(
            jax.ShapeDtypeStruct((B, L_pad), jnp.float32),
            jax.ShapeDtypeStruct((B, 128), jnp.int32),
        ),
        grid=grid,
        in_specs=[
            pl.BlockSpec((TB, H), lambda i: (i, 0)),   # CLS activations
            whole(wp_t.shape),                         # W_pool (VMEM resident)
            whole(bp.shape),                           # b_pool
            whole(wc_t.shape),                         # W_cls  (VMEM resident)
            whole(bc.shape),                           # b_cls
        ],
        out_specs=(
            pl.BlockSpec((TB, L_pad), lambda i: (i, 0)),
            pl.BlockSpec((TB, 128), lambda i: (i, 0)),
        ),
        compiler_params=pltpu.CompilerParams(
            dimension_semantics=("parallel",)),
    )(x_cls, wp_t, bp, wc_t, bc)

    # TODO(synk): for very large hidden sizes (H >~ 2k) add a K-reduction grid
    # axis over H (accumulate pooled in a VMEM scratch with pl.when init) so
    # weight tiles stream through VMEM instead of living there whole (needed
    # under v7x's 64 MiB VMEM).

    u_logits = logits_pad[:, :L] if L_pad != L else logits_pad
    ret = {"U_LOGITS": u_logits}
    if not training:
        ret["OUTPUT"] = idx[:, 0]
    return ret


if __name__ == "__main__":
    # Small, module-consistent shapes; LABELS matches the module default 3129.
    B, S, H, LABELS = 2, 8, 32, 3129

    key = jax.random.PRNGKey(0)
    k1, k2, k3, k4, k5 = jax.random.split(key, 5)

    # Upstream encoder activations (bf16, as a bf16 inference stack emits).
    hidden_states = jax.random.normal(
        k1, (B, S, H), dtype=jnp.float32).astype(jnp.bfloat16)
    # PyTorch Linear-shaped parameters ([out, in]), f32 master copies.
    w_pool = jax.random.normal(k2, (H, H), dtype=jnp.float32) * 0.05
    b_pool = jax.random.normal(k3, (H,), dtype=jnp.float32) * 0.05
    w_cls = jax.random.normal(k4, (LABELS, H), dtype=jnp.float32) * 0.05
    b_cls = jax.random.normal(k5, (LABELS,), dtype=jnp.float32) * 0.05

    params = prepare_predictor_params(w_pool, b_pool, w_cls, b_cls,
                                      param_dtype=jnp.bfloat16)

    ret = single_stream_mm_predictor(hidden_states, params, training=False)
    u_logits, outputs = ret["U_LOGITS"], ret["OUTPUT"]
    jax.block_until_ready((u_logits, outputs))

    # Reference in plain JAX, using the SAME bf16-rounded params/activations
    # the kernel consumes (f32 accumulation both ways).
    x_f = hidden_states[:, 0, :].astype(jnp.float32)
    wp_f = params["wp_t"].astype(jnp.float32)
    wc_f = params["wc_t"][:, :LABELS].astype(jnp.float32)
    bp_f = params["bp"][0]
    bc_f = params["bc"][0, :LABELS]
    pooled_ref = jnp.tanh(x_f @ wp_f + bp_f)
    pooled_ref = pooled_ref.astype(jnp.bfloat16).astype(jnp.float32)
    logits_ref = pooled_ref @ wc_f + bc_f
    out_ref = jnp.argmax(jax.nn.softmax(logits_ref, axis=-1), axis=1)

    assert u_logits.shape == (B, LABELS)
    assert outputs.shape == (B,)
    assert jnp.allclose(u_logits, logits_ref, atol=5e-3, rtol=5e-3), (
        float(jnp.max(jnp.abs(u_logits - logits_ref))))
    assert jnp.array_equal(outputs, out_ref.astype(jnp.int32))

    print("KERNEL_OK")
</pallas_src>

<mosaic_0001>
module attributes {stable_mosaic.version = 11 : i64} {
  func.func @_predictor_kernel(%arg0: i32, %arg1: memref<2x32xbf16, #tpu.memory_space<vmem>>, %arg2: memref<32x32xbf16, #tpu.memory_space<vmem>>, %arg3: memref<1x32xf32, #tpu.memory_space<vmem>>, %arg4: memref<32x3200xbf16, #tpu.memory_space<vmem>>, %arg5: memref<1x3200xf32, #tpu.memory_space<vmem>>, %arg6: memref<2x3200xf32, #tpu.memory_space<vmem>>, %arg7: memref<2x128xi32, #tpu.memory_space<vmem>>) attributes {dimension_semantics = [#tpu.dimension_semantics<parallel>], iteration_bounds = array<i64: 1>, scalar_prefetch = 0 : i64, scratch_operands = 0 : i64, tpu.core_type = #tpu.core_type<tc>, window_params = [{transform_indices = @transform_0, window_bounds = array<i64: 2, 32>}, {pipeline_mode = #tpu.pipeline_mode<synchronous>, transform_indices = @transform_1, window_bounds = array<i64: 32, 32>}, {pipeline_mode = #tpu.pipeline_mode<synchronous>, transform_indices = @transform_2, window_bounds = array<i64: 1, 32>}, {pipeline_mode = #tpu.pipeline_mode<synchronous>, transform_indices = @transform_3, window_bounds = array<i64: 32, 3200>}, {pipeline_mode = #tpu.pipeline_mode<synchronous>, transform_indices = @transform_4, window_bounds = array<i64: 1, 3200>}, {transform_indices = @transform_5, window_bounds = array<i64: 2, 3200>}, {transform_indices = @transform_6, window_bounds = array<i64: 2, 128>}]} {
    %c0 = arith.constant 0 : index
    %c0_0 = arith.constant 0 : index
    %0 = vector.load %arg1[%c0, %c0_0] : memref<2x32xbf16, #tpu.memory_space<vmem>>, vector<2x32xbf16>
    %c0_1 = arith.constant 0 : index
    %c0_2 = arith.constant 0 : index
    %1 = vector.load %arg2[%c0_1, %c0_2] : memref<32x32xbf16, #tpu.memory_space<vmem>>, vector<32x32xbf16>
    %cst = arith.constant dense<0.000000e+00> : vector<2x32xf32>
    %2 = tpu.matmul %0, %1, %cst {dimension_numbers = #tpu.dot_dimension_numbers<[1], [0], [0], [1], [0, 0, 1, 1], [], []>} : vector<2x32xbf16>, vector<32x32xbf16>, vector<2x32xf32> -> vector<2x32xf32>
    %c0_3 = arith.constant 0 : index
    %c0_4 = arith.constant 0 : index
    %3 = vector.load %arg3[%c0_3, %c0_4] : memref<1x32xf32, #tpu.memory_space<vmem>>, vector<1x32xf32>
    %4 = vector.broadcast %3 : vector<1x32xf32> to vector<2x32xf32>
    %5 = arith.addf %2, %4 : vector<2x32xf32>
    %6 = math.tanh %5 : vector<2x32xf32>
    %7 = arith.truncf %6 : vector<2x32xf32> to vector<2x32xbf16>
    %c0_5 = arith.constant 0 : index
    %c0_6 = arith.constant 0 : index
    %8 = vector.load %arg4[%c0_5, %c0_6] : memref<32x3200xbf16, #tpu.memory_space<vmem>>, vector<32x3200xbf16>
    %cst_7 = arith.constant dense<0.000000e+00> : vector<2x3200xf32>
    %9 = tpu.matmul %7, %8, %cst_7 {dimension_numbers = #tpu.dot_dimension_numbers<[1], [0], [0], [1], [0, 0, 1, 1], [], []>} : vector<2x32xbf16>, vector<32x3200xbf16>, vector<2x3200xf32> -> vector<2x3200xf32>
    %c0_8 = arith.constant 0 : index
    %c0_9 = arith.constant 0 : index
    %10 = vector.load %arg5[%c0_8, %c0_9] : memref<1x3200xf32, #tpu.memory_space<vmem>>, vector<1x3200xf32>
    %11 = vector.broadcast %10 : vector<1x3200xf32> to vector<2x3200xf32>
    %12 = arith.addf %9, %11 : vector<2x3200xf32>
    %c0_10 = arith.constant 0 : index
    %c0_11 = arith.constant 0 : index
    %13 = vector.load %arg6[%c0_10, %c0_11] : memref<2x3200xf32, #tpu.memory_space<vmem>>, vector<2x3200xf32>
    tpu.vector_store %arg6[%c0_10, %c0_11], %12 {strides = array<i32>} : memref<2x3200xf32, #tpu.memory_space<vmem>>, vector<2x3200xf32>,
    %14 = tpu.iota {dimensions = array<i32: 1>} : vector<2x3200xi32>
    %cst_12 = arith.constant dense<0xFF800000> : vector<2xf32>
    %15 = vector.multi_reduction <maximumf>, %12, %cst_12 [1] : vector<2x3200xf32> to vector<2xf32>
    %16 = vector.shape_cast %15 : vector<2xf32> to vector<2x1xf32>
    %17 = vector.broadcast %16 : vector<2x1xf32> to vector<2x3200xf32>
    %18 = arith.cmpf oeq, %12, %17 : vector<2x3200xf32>
    %c3200_i32 = arith.constant 3200 : i32
    %19 = vector.broadcast %c3200_i32 : i32 to vector<2x3200xi32>
    %20 = arith.select %18, %14, %19 : vector<2x3200xi1>, vector<2x3200xi32>
    %cst_13 = arith.constant dense<2147483647> : vector<2xi32>
    %21 = vector.multi_reduction <minsi>, %20, %cst_13 [1] : vector<2x3200xi32> to vector<2xi32>
    %22 = vector.shape_cast %21 : vector<2xi32> to vector<2x1xi32>
    %23 = vector.shape_cast %22 : vector<2x1xi32> to vector<2x1xi32>
    %24 = vector.broadcast %23 : vector<2x1xi32> to vector<2x128xi32>
    %c0_14 = arith.constant 0 : index
    %c0_15 = arith.constant 0 : index
    %25 = vector.load %arg7[%c0_14, %c0_15] : memref<2x128xi32, #tpu.memory_space<vmem>>, vector<2x128xi32>
    tpu.vector_store %arg7[%c0_14, %c0_15], %24 {strides = array<i32>} : memref<2x128xi32, #tpu.memory_space<vmem>>, vector<2x128xi32>,
    return
  }
  func.func @transform_0(%arg0: i32) -> (i32, i32) {
    %c0_i32 = arith.constant 0 : i32
    %c0_i32_0 = arith.constant 0 : i32
    return %arg0, %c0_i32 : i32, i32
  }
  func.func @transform_1(%arg0: i32) -> (i32, i32) {
    %c0_i32 = arith.constant 0 : i32
    %c0_i32_0 = arith.constant 0 : i32
    %c0_i32_1 = arith.constant 0 : i32
    return %c0_i32, %c0_i32_0 : i32, i32
  }
  func.func @transform_2(%arg0: i32) -> (i32, i32) {
    %c0_i32 = arith.constant 0 : i32
    %c0_i32_0 = arith.constant 0 : i32
    %c0_i32_1 = arith.constant 0 : i32
    return %c0_i32, %c0_i32_0 : i32, i32
  }
  func.func @transform_3(%arg0: i32) -> (i32, i32) {
    %c0_i32 = arith.constant 0 : i32
    %c0_i32_0 = arith.constant 0 : i32
    %c0_i32_1 = arith.constant 0 : i32
    return %c0_i32, %c0_i32_0 : i32, i32
  }
  func.func @transform_4(%arg0: i32) -> (i32, i32) {
    %c0_i32 = arith.constant 0 : i32
    %c0_i32_0 = arith.constant 0 : i32
    %c0_i32_1 = arith.constant 0 : i32
    return %c0_i32, %c0_i32_0 : i32, i32
  }
  func.func @transform_5(%arg0: i32) -> (i32, i32) {
    %c0_i32 = arith.constant 0 : i32
    %c0_i32_0 = arith.constant 0 : i32
    return %arg0, %c0_i32 : i32, i32
  }
  func.func @transform_6(%arg0: i32) -> (i32, i32) {
    %c0_i32 = arith.constant 0 : i32
    %c0_i32_0 = arith.constant 0 : i32
    return %arg0, %c0_i32 : i32, i32
  }
}

</mosaic_0001>

<llo_original>
// kernel: tpu_custom_call.1
$region0: #{tpu_custom_call.1}
  #allocation0 [shape = 'u32[]', space=smem, size = 0x4, offset = 0x4, fixed_abs, tag = 'smem constant byte address 0x4 - core index']
  #allocation1 [shape = 'u32[144,128]{1,0:T(1,128)}', space=vmem, size = 0x12000, scoped, tag = 'internal scratch']
  %s0 = inlined_call_operand.hbm [shape: bf16[2,32], index: 0, kind: input, shape index: {}]
  %s1 = inlined_call_operand.hbm [shape: bf16[32,32], index: 1, kind: input, shape index: {}]
  %s2 = inlined_call_operand.vmem [shape: f32[1,32], index: 2, kind: input, shape index: {}]
  %s3 = inlined_call_operand.hbm [shape: bf16[32,3200], index: 3, kind: input, shape index: {}]
  %s4 = inlined_call_operand.hbm [shape: f32[1,3200], index: 4, kind: input, shape index: {}]
  %s5 = inlined_call_operand.hbm [shape: f32[2,3200], index: 5, kind: output, shape index: {0}]
  %s6 = inlined_call_operand.hbm [shape: s32[2,128], index: 6, kind: output, shape index: {1}]
  %7 = xla_tuple %s5, %s6
  %s8 = sld [smem:[#allocation0]]
  $region54: #{tpu_custom_call.1} parent=0
    _
  %s10 = ssub.s32 1, %s8
  %s11 = scalar_select 0, %s10, %s8
  $region1: #{tpu_custom_call.1} parent=0
    #allocation2 [shape = 'u8[512]{0}', space=vmem, size = 0x400, scoped, tag = 'input window, operand 0, single buffered']
    #allocation3 [shape = 's32[1]{0}', space=sflag, size = 0x4, scoped, tag = 'scoped memory for tpu_custom_call.1']
    #allocation4 [shape = 's32[1]{0}', space=sflag, size = 0x4, scoped, tag = 'scoped memory for tpu_custom_call.1']
    #allocation5 [shape = 'u8[8192]{0}', space=vmem, size = 0x2000, scoped, tag = 'input window, operand 1, single buffered']
    #allocation6 [shape = 's32[1]{0}', space=sflag, size = 0x4, scoped, tag = 'scoped memory for tpu_custom_call.1']
    #allocation7 [shape = 'u8[204800]{0}', space=vmem, size = 0x32000, scoped, tag = 'input window, operand 3, single buffered']
    #allocation8 [shape = 'u8[12800]{0}', space=vmem, size = 0x3400, scoped, tag = 'input window, operand 4, single buffered']
    #allocation9 [shape = 's32[1]{0}', space=sflag, size = 0x4, scoped, tag = 'scoped memory for tpu_custom_call.1']
    #allocation10 [shape = 'u8[25600]{0}', space=vmem, size = 0x6400, scoped, tag = 'output window, operand 0, single buffered']
    #allocation11 [shape = 'u8[1024]{0}', space=vmem, size = 0x400, scoped, tag = 'output window, operand 1, single buffered']
    #allocation12 [shape = 's32[1]{0}', space=sflag, size = 0x4, scoped, tag = 'scoped memory for tpu_custom_call.1']
    %12 = vsyncpa [#allocation3], 0
    %13 = vsyncpa [#allocation6], 0
    %14 = vsyncpa [#allocation9], 0
    %15 = vsyncpa [#allocation4], 0
    %16 = vsyncpa [#allocation12], 0
    // Predicated region
    $region2: #{tpu_custom_call.1} parent=1 // pred_check
      _
    $region3: #{tpu_custom_call.1} parent=1 // pred_check_branch
      %18 = sbr.rel (0) target = $region5
    $region4: #{tpu_custom_call.1} parent=1 // pred_region
      %s20 = ssub.s32 16, 16
      %21 = vsyncadd [#allocation3], %s20
      %s23 = sshll.u32 [#allocation2], 4
      %s24 = int_to_ptr.vmem [resolvable:$true] %s23
      %26 = dma.hbm_to_vmem [thread:$0]  %s0, 16, %s24, [#allocation3]
    $region5: #{tpu_custom_call.1} parent=1 // pred_fallthru
      _
    // Predicated region
    $region6: #{tpu_custom_call.1} parent=1 // pred_check
      _
    $region7: #{tpu_custom_call.1} parent=1 // pred_check_branch
      %28 = sbr.rel (0) target = $region9
    $region8: #{tpu_custom_call.1} parent=1 // pred_region
      %s30 = ssub.s32 256, 256
      %31 = vsyncadd [#allocation6], %s30
      %s32 = sshll.u32 [#allocation5], 4
      %s33 = int_to_ptr.vmem [resolvable:$true] %s32
      %38 = dma.hbm_to_vmem [thread:$0]  %s1, 256, %s33, [#allocation6], 64, 64, 4
    $region9: #{tpu_custom_call.1} parent=1 // pred_fallthru
      _
    // Predicated region
    $region10: #{tpu_custom_call.1} parent=1 // pred_check
      _
    $region11: #{tpu_custom_call.1} parent=1 // pred_check_branch
      %40 = sbr.rel (0) target = $region13
    $region12: #{tpu_custom_call.1} parent=1 // pred_region
      _
    $region13: #{tpu_custom_call.1} parent=1 // pred_fallthru
      _
    // Predicated region
    $region14: #{tpu_custom_call.1} parent=1 // pred_check
      _
    $region15: #{tpu_custom_call.1} parent=1 // pred_check_branch
      %42 = sbr.rel (0) target = $region17
    $region16: #{tpu_custom_call.1} parent=1 // pred_region
      %s44 = ssub.s32 6400, 6400
      %45 = vsyncadd [#allocation6], %s44
      %s46 = sshll.u32 [#allocation7], 4
      %s47 = int_to_ptr.vmem [resolvable:$true] %s46
      %52 = dma.hbm_to_vmem [thread:$0]  %s3, 6400, %s47, [#allocation6], 1600, 1600, 100
    $region17: #{tpu_custom_call.1} parent=1 // pred_fallthru
      _
    // Predicated region
    $region18: #{tpu_custom_call.1} parent=1 // pred_check
      _
    $region19: #{tpu_custom_call.1} parent=1 // pred_check_branch
      %54 = sbr.rel (0) target = $region21
    $region20: #{tpu_custom_call.1} parent=1 // pred_region
      %s56 = ssub.s32 400, 400
      %57 = vsyncadd [#allocation9], %s56
      %s59 = sshll.u32 [#allocation8], 4
      %s60 = int_to_ptr.vmem [resolvable:$true] %s59
      %62 = dma.hbm_to_vmem [thread:$0]  %s4, 400, %s60, [#allocation9]
    $region21: #{tpu_custom_call.1} parent=1 // pred_fallthru
      _
    // Predicated region
    $region22: #{tpu_custom_call.1} parent=1 // pred_check
      _
    $region23: #{tpu_custom_call.1} parent=1 // pred_check_branch
      %64 = sbr.rel (0) target = $region25
    $region24: #{tpu_custom_call.1} parent=1 // pred_region
      %65 = dma.done [#allocation3], 16
    $region25: #{tpu_custom_call.1} parent=1 // pred_fallthru
      _
    // Predicated region
    $region26: #{tpu_custom_call.1} parent=1 // pred_check
      _
    $region27: #{tpu_custom_call.1} parent=1 // pred_check_branch
      %67 = sbr.rel (0) target = $region29
    $region28: #{tpu_custom_call.1} parent=1 // pred_region
      %68 = dma.done [#allocation6], 256
    $region29: #{tpu_custom_call.1} parent=1 // pred_fallthru
      _
    // Predicated region
    $region30: #{tpu_custom_call.1} parent=1 // pred_check
      _
    $region31: #{tpu_custom_call.1} parent=1 // pred_check_branch
      %70 = sbr.rel (0) target = $region33
    $region32: #{tpu_custom_call.1} parent=1 // pred_region
      %71 = dma.done [#allocation6], 6400
    $region33: #{tpu_custom_call.1} parent=1 // pred_fallthru
      _
    // Predicated region
    $region34: #{tpu_custom_call.1} parent=1 // pred_check
      _
    $region35: #{tpu_custom_call.1} parent=1 // pred_check_branch
      %73 = sbr.rel (0) target = $region37
    $region36: #{tpu_custom_call.1} parent=1 // pred_region
      %74 = dma.done [#allocation9], 400
    $region37: #{tpu_custom_call.1} parent=1 // pred_fallthru
      _
    %v76 = vld [vmem:[#allocation2] sm:$0x1]
    %v77 = vld [vmem:[#allocation5] sm:$0xf]
    %v78 = vld [vmem:[#allocation5 + $0x4] sm:$0xf]
    %v79 = vld [vmem:[#allocation5 + $0x8] sm:$0xf]
    %v80 = vld [vmem:[#allocation5 + $0xc] sm:$0xf]
    %v81 = vld [vmem:[%s2] sm:$0x1]
    %v83 = vlaneseq
    %v84 = vshrl.u32 %v83, 7
    %v85 = vsub.s32 0, %v84
    %v86 = vrot.slane %v81, %v85
    %v92 = vunpack.c.l.b16 %v77
    %v93 = vunpack.c.l.b16 %v78
    %v94 = vunpack.c.l.b16 %v79
    %v95 = vunpack.c.l.b16 %v80
    %v96 = vpack.c.b16 %v93, %v92
    %v97 = vpack.c.b16 %v95, %v94
    %vm100 = vcmask 261120
    %v102 = vsel %vm100, %v76, 0
    %104 = vmatprep.subr.bf16.mxu0 0
    %105 = vmatpush1.bf16.msra.mxu0 0
    %106 = vmatprep.subr.bf16.mxu0 0
    %107 = vmatpush1.bf16.msra.mxu0 0
    %108 = vmatprep.subr.bf16.mxu0 0
    %109 = vmatpush1.bf16.msra.mxu0 0
    %110 = vmatprep.subr.bf16.mxu0 0
    %111 = vmatpush1.bf16.msra.mxu0 0
    %112 = vmatprep.subr.bf16.mxu0 0
    %113 = vmatpush1.bf16.msra.mxu0 0
    %114 = vmatprep.subr.bf16.mxu0 0
    %115 = vmatpush1.bf16.msra.mxu0 0
    %116 = vmatprep.subr.bf16.mxu0 0
    %117 = vmatpush1.bf16.msra.mxu0 %v97
    %118 = vmatprep.subr.bf16.mxu0 0
    %119 = vmatpush1.bf16.msra.mxu0 %v96
    %120 = vmatprep.subr.bf16.mxu0 0
    %121 = vmatpush2.bf16.msra.mxu0 0
    %122 = vmatprep.subr.bf16.mxu0 0
    %123 = vmatpush2.bf16.msra.mxu0 0
    %124 = vmatprep.subr.bf16.mxu0 0
    %125 = vmatpush2.bf16.msra.mxu0 0
    %126 = vmatprep.subr.bf16.mxu0 0
    %127 = vmatpush2.bf16.msra.mxu0 0
    %128 = vmatprep.subr.bf16.mxu0 0
    %129 = vmatpush2.bf16.msra.mxu0 0
    %130 = vmatprep.subr.bf16.mxu0 0
    %131 = vmatpush2.bf16.msra.mxu0 0
    %132 = vmatprep.subr.bf16.mxu0 0
    %133 = vmatpush2.bf16.msra.mxu0 0
    %134 = vmatprep.subr.bf16.mxu0 0
    %135 = vmatpush2.bf16.msra.mxu0 0
    %136 = vmatprep.mubr.bf16.mxu0 0
    %137 = vmatmul.mubr.bf16.gmra.mxu0 %v102
    %v138 = vpop.f32.mrf.mxu0
    %v139 = vadd.f32 %v86, %v138
    %v140 = vpop.f32.mrf.mxu0
    %v141 = vpop.f32.mrf.mxu0
    %v142 = vpop.f32.mrf.mxu0
    %143 = vdwg.mxu0
    %v144 = vtanh.pop %v139
    %v145 = vpack.c.bf16 %v144, %v144
    %v146 = vld [vmem:[#allocation7] sm:$0xff]
    %v147 = vld [vmem:[#allocation7 + $0x8] sm:$0xff]
    %v148 = vld [vmem:[#allocation7 + $0x10] sm:$0xff]
    %v149 = vld [vmem:[#allocation7 + $0x18] sm:$0xff]
    %v150 = vld [vmem:[#allocation7 + $0x20] sm:$0xff]
    %v151 = vld [vmem:[#allocation7 + $0x28] sm:$0xff]
    %v152 = vld [vmem:[#allocation7 + $0x30] sm:$0xff]
    %v153 = vld [vmem:[#allocation7 + $0x38] sm:$0xff]
    %v154 = vld [vmem:[#allocation7 + $0x40] sm:$0xff]
    %v155 = vld [vmem:[#allocation7 + $0x48] sm:$0xff]
    %v156 = vld [vmem:[#allocation7 + $0x50] sm:$0xff]
    %v157 = vld [vmem:[#allocation7 + $0x58] sm:$0xff]
    %v158 = vld [vmem:[#allocation7 + $0x60] sm:$0xf]
    %v159 = vld [vmem:[#allocation7 + $0x64] sm:$0xff]
    %v160 = vld [vmem:[#allocation7 + $0x6c] sm:$0xff]
    %v161 = vld [vmem:[#allocation7 + $0x74] sm:$0xff]
    %v162 = vld [vmem:[#allocation7 + $0x7c] sm:$0xff]
    %v163 = vld [vmem:[#allocation7 + $0x84] sm:$0xff]
    %v164 = vld [vmem:[#allocation7 + $0x8c] sm:$0xff]
    %v165 = vld [vmem:[#allocation7 + $0x94] sm:$0xff]
    %v166 = vld [vmem:[#allocation7 + $0x9c] sm:$0xff]
    %v167 = vld [vmem:[#allocation7 + $0xa4] sm:$0xff]
    %v168 = vld [vmem:[#allocation7 + $0xac] sm:$0xff]
    %v169 = vld [vmem:[#allocation7 + $0xb4] sm:$0xff]
    %v170 = vld [vmem:[#allocation7 + $0xbc] sm:$0xff]
    %v171 = vld [vmem:[#allocation7 + $0xc4] sm:$0xf]
    %v172 = vld [vmem:[#allocation7 + $0xc8] sm:$0xff]
    %v173 = vld [vmem:[#allocation7 + $0xd0] sm:$0xff]
    %v174 = vld [vmem:[#allocation7 + $0xd8] sm:$0xff]
    %v175 = vld [vmem:[#allocation7 + $0xe0] sm:$0xff]
    %v176 = vld [vmem:[#allocation7 + $0xe8] sm:$0xff]
    %v177 = vld [vmem:[#allocation7 + $0xf0] sm:$0xff]
    %v178 = vld [vmem:[#allocation7 + $0xf8] sm:$0xff]
    %v179 = vld [vmem:[#allocation7 + $0x100] sm:$0xff]
    %v180 = vld [vmem:[#allocation7 + $0x108] sm:$0xff]
    %v181 = vld [vmem:[#allocation7 + $0x110] sm:$0xff]
    %v182 = vld [vmem:[#allocation7 + $0x118] sm:$0xff]
    %v183 = vld [vmem:[#allocation7 + $0x120] sm:$0xff]
    %v184 = vld [vmem:[#allocation7 + $0x128] sm:$0xf]
    %v185 = vld [vmem:[#allocation7 + $0x12c] sm:$0xff]
    %v186 = vld [vmem:[#allocation7 + $0x134] sm:$0xff]
    %v187 = vld [vmem:[#allocation7 + $0x13c] sm:$0xff]
    %v188 = vld [vmem:[#allocation7 + $0x144] sm:$0xff]
    %v189 = vld [vmem:[#allocation7 + $0x14c] sm:$0xff]
    %v190 = vld [vmem:[#allocation7 + $0x154] sm:$0xff]
    %v191 = vld [vmem:[#allocation7 + $0x15c] sm:$0xff]
    %v192 = vld [vmem:[#allocation7 + $0x164] sm:$0xff]
    %v193 = vld [vmem:[#allocation7 + $0x16c] sm:$0xff]
    %v194 = vld [vmem:[#allocation7 + $0x174] sm:$0xff]
    %v195 = vld [vmem:[#allocation7 + $0x17c] sm:$0xff]
    %v196 = vld [vmem:[#allocation7 + $0x184] sm:$0xff]
    %v197 = vld [vmem:[#allocation7 + $0x18c] sm:$0xf]
    %v198 = vld [vmem:[#allocation8] sm:$0xff]
    %v199 = vld [vmem:[#allocation8 + $0x8] sm:$0xff]
    %v200 = vld [vmem:[#allocation8 + $0x10] sm:$0xff]
    %v201 = vld [vmem:[#allocation8 + $0x18] sm:$0x1]
    %v206 = vlaneseq
    %v207 = vshrl.u32 %v206, 7
    %v208 = vsub.s32 0, %v207
    %v209 = vrot.slane %v198, %v208
    %v210 = vlaneseq
    %v211 = vshrl.u32 %v210, 7
    %v212 = vsub.s32 1, %v211
    %v213 = vrot.slane %v198, %v212
    %v214 = vlaneseq
    %v215 = vshrl.u32 %v214, 7
    %v216 = vsub.s32 2, %v215
    %v217 = vrot.slane %v198, %v216
    %v218 = vlaneseq
    %v219 = vshrl.u32 %v218, 7
    %v220 = vsub.s32 3, %v219
    %v221 = vrot.slane %v198, %v220
    %v222 = vlaneseq
    %v223 = vshrl.u32 %v222, 7
    %v224 = vsub.s32 4, %v223
    %v225 = vrot.slane %v198, %v224
    %v226 = vlaneseq
    %v227 = vshrl.u32 %v226, 7
    %v228 = vsub.s32 5, %v227
    %v229 = vrot.slane %v198, %v228
    %v230 = vlaneseq
    %v231 = vshrl.u32 %v230, 7
    %v232 = vsub.s32 6, %v231
    %v233 = vrot.slane %v198, %v232
    %v234 = vlaneseq
    %v235 = vshrl.u32 %v234, 7
    %v236 = vsub.s32 7, %v235
    %v237 = vrot.slane %v198, %v236
    %v238 = vlaneseq
    %v239 = vshrl.u32 %v238, 7
    %v240 = vsub.s32 0, %v239
    %v241 = vrot.slane %v199, %v240
    %v242 = vlaneseq
    %v243 = vshrl.u32 %v242, 7
    %v244 = vsub.s32 1, %v243
    %v245 = vrot.slane %v199, %v244
    %v246 = vlaneseq
    %v247 = vshrl.u32 %v246, 7
    %v248 = vsub.s32 2, %v247
    %v249 = vrot.slane %v199, %v248
    %v250 = vlaneseq
    %v251 = vshrl.u32 %v250, 7
    %v252 = vsub.s32 3, %v251
    %v253 = vrot.slane %v199, %v252
    %v254 = vlaneseq
    %v255 = vshrl.u32 %v254, 7
    %v256 = vsub.s32 4, %v255
    %v257 = vrot.slane %v199, %v256
    %v258 = vlaneseq
    %v259 = vshrl.u32 %v258, 7
    %v260 = vsub.s32 5, %v259
    %v261 = vrot.slane %v199, %v260
    %v262 = vlaneseq
    %v263 = vshrl.u32 %v262, 7
    %v264 = vsub.s32 6, %v263
    %v265 = vrot.slane %v199, %v264
    %v266 = vlaneseq
    %v267 = vshrl.u32 %v266, 7
    %v268 = vsub.s32 7, %v267
    %v269 = vrot.slane %v199, %v268
    %v270 = vlaneseq
    %v271 = vshrl.u32 %v270, 7
    %v272 = vsub.s32 0, %v271
    %v273 = vrot.slane %v200, %v272
    %v274 = vlaneseq
    %v275 = vshrl.u32 %v274, 7
    %v276 = vsub.s32 1, %v275
    %v277 = vrot.slane %v200, %v276
    %v278 = vlaneseq
    %v279 = vshrl.u32 %v278, 7
    %v280 = vsub.s32 2, %v279
    %v281 = vrot.slane %v200, %v280
    %v282 = vlaneseq
    %v283 = vshrl.u32 %v282, 7
    %v284 = vsub.s32 3, %v283
    %v285 = vrot.slane %v200, %v284
    %v286 = vlaneseq
    %v287 = vshrl.u32 %v286, 7
    %v288 = vsub.s32 4, %v287
    %v289 = vrot.slane %v200, %v288
    %v290 = vlaneseq
    %v291 = vshrl.u32 %v290, 7
    %v292 = vsub.s32 5, %v291
    %v293 = vrot.slane %v200, %v292
    %v294 = vlaneseq
    %v295 = vshrl.u32 %v294, 7
    %v296 = vsub.s32 6, %v295
    %v297 = vrot.slane %v200, %v296
    %v298 = vlaneseq
    %v299 = vshrl.u32 %v298, 7
    %v300 = vsub.s32 7, %v299
    %v301 = vrot.slane %v200, %v300
    %v302 = vlaneseq
    %v303 = vshrl.u32 %v302, 7
    %v304 = vsub.s32 0, %v303
    %v305 = vrot.slane %v201, %v304
    %v383 = vunpack.c.l.b16 %v146
    %v384 = vunpack.c.h.b16 %v146
    %v385 = vunpack.c.l.b16 %v147
    %v386 = vunpack.c.h.b16 %v147
    %v387 = vunpack.c.l.b16 %v148
    %v388 = vunpack.c.h.b16 %v148
    %v389 = vunpack.c.l.b16 %v149
    %v390 = vunpack.c.h.b16 %v149
    %v391 = vunpack.c.l.b16 %v150
    %v392 = vunpack.c.h.b16 %v150
    %v393 = vunpack.c.l.b16 %v151
    %v394 = vunpack.c.h.b16 %v151
    %v395 = vunpack.c.l.b16 %v152
    %v396 = vunpack.c.h.b16 %v152
    %v397 = vunpack.c.l.b16 %v153
    %v398 = vunpack.c.h.b16 %v153
    %v399 = vunpack.c.l.b16 %v154
    %v400 = vunpack.c.h.b16 %v154
    %v401 = vunpack.c.l.b16 %v155
    %v402 = vunpack.c.h.b16 %v155
    %v403 = vunpack.c.l.b16 %v156
    %v404 = vunpack.c.h.b16 %v156
    %v405 = vunpack.c.l.b16 %v157
    %v406 = vunpack.c.h.b16 %v157
    %v407 = vunpack.c.l.b16 %v158
    %v408 = vunpack.c.l.b16 %v159
    %v409 = vunpack.c.h.b16 %v159
    %v410 = vunpack.c.l.b16 %v160
    %v411 = vunpack.c.h.b16 %v160
    %v412 = vunpack.c.l.b16 %v161
    %v413 = vunpack.c.h.b16 %v161
    %v414 = vunpack.c.l.b16 %v162
    %v415 = vunpack.c.h.b16 %v162
    %v416 = vunpack.c.l.b16 %v163
    %v417 = vunpack.c.h.b16 %v163
    %v418 = vunpack.c.l.b16 %v164
    %v419 = vunpack.c.h.b16 %v164
    %v420 = vunpack.c.l.b16 %v165
    %v421 = vunpack.c.h.b16 %v165
    %v422 = vunpack.c.l.b16 %v166
    %v423 = vunpack.c.h.b16 %v166
    %v424 = vunpack.c.l.b16 %v167
    %v425 = vunpack.c.h.b16 %v167
    %v426 = vunpack.c.l.b16 %v168
    %v427 = vunpack.c.h.b16 %v168
    %v428 = vunpack.c.l.b16 %v169
    %v429 = vunpack.c.h.b16 %v169
    %v430 = vunpack.c.l.b16 %v170
    %v431 = vunpack.c.h.b16 %v170
    %v432 = vunpack.c.l.b16 %v171
    %v433 = vunpack.c.l.b16 %v172
    %v434 = vunpack.c.h.b16 %v172
    %v435 = vunpack.c.l.b16 %v173
    %v436 = vunpack.c.h.b16 %v173
    %v437 = vunpack.c.l.b16 %v174
    %v438 = vunpack.c.h.b16 %v174
    %v439 = vunpack.c.l.b16 %v175
    %v440 = vunpack.c.h.b16 %v175
    %v441 = vunpack.c.l.b16 %v176
    %v442 = vunpack.c.h.b16 %v176
    %v443 = vunpack.c.l.b16 %v177
    %v444 = vunpack.c.h.b16 %v177
    %v445 = vunpack.c.l.b16 %v178
    %v446 = vunpack.c.h.b16 %v178
    %v447 = vunpack.c.l.b16 %v179
    %v448 = vunpack.c.h.b16 %v179
    %v449 = vunpack.c.l.b16 %v180
    %v450 = vunpack.c.h.b16 %v180
    %v451 = vunpack.c.l.b16 %v181
    %v452 = vunpack.c.h.b16 %v181
    %v453 = vunpack.c.l.b16 %v182
    %v454 = vunpack.c.h.b16 %v182
    %v455 = vunpack.c.l.b16 %v183
    %v456 = vunpack.c.h.b16 %v183
    %v457 = vunpack.c.l.b16 %v184
    %v458 = vunpack.c.l.b16 %v185
    %v459 = vunpack.c.h.b16 %v185
    %v460 = vunpack.c.l.b16 %v186
    %v461 = vunpack.c.h.b16 %v186
    %v462 = vunpack.c.l.b16 %v187
    %v463 = vunpack.c.h.b16 %v187
    %v464 = vunpack.c.l.b16 %v188
    %v465 = vunpack.c.h.b16 %v188
    %v466 = vunpack.c.l.b16 %v189
    %v467 = vunpack.c.h.b16 %v189
    %v468 = vunpack.c.l.b16 %v190
    %v469 = vunpack.c.h.b16 %v190
    %v470 = vunpack.c.l.b16 %v191
    %v471 = vunpack.c.h.b16 %v191
    %v472 = vunpack.c.l.b16 %v192
    %v473 = vunpack.c.h.b16 %v192
    %v474 = vunpack.c.l.b16 %v193
    %v475 = vunpack.c.h.b16 %v193
    %v476 = vunpack.c.l.b16 %v194
    %v477 = vunpack.c.h.b16 %v194
    %v478 = vunpack.c.l.b16 %v195
    %v479 = vunpack.c.h.b16 %v195
    %v480 = vunpack.c.l.b16 %v196
    %v481 = vunpack.c.h.b16 %v196
    %v482 = vunpack.c.l.b16 %v197
    %v483 = vpack.c.b16 %v408, %v383
    %v484 = vpack.c.b16 %v409, %v384
    %v485 = vpack.c.b16 %v410, %v385
    %v486 = vpack.c.b16 %v411, %v386
    %v487 = vpack.c.b16 %v412, %v387
    %v488 = vpack.c.b16 %v413, %v388
    %v489 = vpack.c.b16 %v414, %v389
    %v490 = vpack.c.b16 %v415, %v390
    %v491 = vpack.c.b16 %v416, %v391
    %v492 = vpack.c.b16 %v417, %v392
    %v493 = vpack.c.b16 %v418, %v393
    %v494 = vpack.c.b16 %v419, %v394
    %v495 = vpack.c.b16 %v420, %v395
    %v496 = vpack.c.b16 %v421, %v396
    %v497 = vpack.c.b16 %v422, %v397
    %v498 = vpack.c.b16 %v423, %v398
    %v499 = vpack.c.b16 %v424, %v399
    %v500 = vpack.c.b16 %v425, %v400
    %v501 = vpack.c.b16 %v426, %v401
    %v502 = vpack.c.b16 %v427, %v402
    %v503 = vpack.c.b16 %v428, %v403
    %v504 = vpack.c.b16 %v429, %v404
    %v505 = vpack.c.b16 %v430, %v405
    %v506 = vpack.c.b16 %v431, %v406
    %v507 = vpack.c.b16 %v432, %v407
    %v508 = vpack.c.b16 %v458, %v433
    %v509 = vpack.c.b16 %v459, %v434
    %v510 = vpack.c.b16 %v460, %v435
    %v511 = vpack.c.b16 %v461, %v436
    %v512 = vpack.c.b16 %v462, %v437
    %v513 = vpack.c.b16 %v463, %v438
    %v514 = vpack.c.b16 %v464, %v439
    %v515 = vpack.c.b16 %v465, %v440
    %v516 = vpack.c.b16 %v466, %v441
    %v517 = vpack.c.b16 %v467, %v442
    %v518 = vpack.c.b16 %v468, %v443
    %v519 = vpack.c.b16 %v469, %v444
    %v520 = vpack.c.b16 %v470, %v445
    %v521 = vpack.c.b16 %v471, %v446
    %v522 = vpack.c.b16 %v472, %v447
    %v523 = vpack.c.b16 %v473, %v448
    %v524 = vpack.c.b16 %v474, %v449
    %v525 = vpack.c.b16 %v475, %v450
    %v526 = vpack.c.b16 %v476, %v451
    %v527 = vpack.c.b16 %v477, %v452
    %v528 = vpack.c.b16 %v478, %v453
    %v529 = vpack.c.b16 %v479, %v454
    %v530 = vpack.c.b16 %v480, %v455
    %v531 = vpack.c.b16 %v481, %v456
    %v532 = vpack.c.b16 %v482, %v457
    %v584 = vsel %vm100, %v145, 0
    %586 = vmatprep.subr.bf16.mxu0 0
    %587 = vmatpush1.bf16.msra.mxu0 0
    %588 = vmatprep.subr.bf16.mxu0 0
    %589 = vmatpush1.bf16.msra.mxu0 0
    %590 = vmatprep.subr.bf16.mxu0 0
    %591 = vmatpush1.bf16.msra.mxu0 0
    %592 = vmatprep.subr.bf16.mxu0 0
    %593 = vmatpush1.bf16.msra.mxu0 0
    %594 = vmatprep.subr.bf16.mxu0 0
    %595 = vmatpush1.bf16.msra.mxu0 0
    %596 = vmatprep.subr.bf16.mxu0 0
    %597 = vmatpush1.bf16.msra.mxu0 0
    %598 = vmatprep.subr.bf16.mxu0 %v509
    %599 = vmatpush1.bf16.msra.mxu0 %v508
    %600 = vmatprep.subr.bf16.mxu0 %v484
    %601 = vmatpush1.bf16.msra.mxu0 %v483
    %602 = vmatprep.subr.bf16.mxu0 0
    %603 = vmatpush2.bf16.msra.mxu0 0
    %604 = vmatprep.subr.bf16.mxu0 0
    %605 = vmatpush2.bf16.msra.mxu0 0
    %606 = vmatprep.subr.bf16.mxu0 0
    %607 = vmatpush2.bf16.msra.mxu0 0
    %608 = vmatprep.subr.bf16.mxu0 0
    %609 = vmatpush2.bf16.msra.mxu0 0
    %610 = vmatprep.subr.bf16.mxu0 0
    %611 = vmatpush2.bf16.msra.mxu0 0
    %612 = vmatprep.subr.bf16.mxu0 0
    %613 = vmatpush2.bf16.msra.mxu0 0
    %614 = vmatprep.subr.bf16.mxu0 0
    %615 = vmatpush2.bf16.msra.mxu0 0
    %616 = vmatprep.subr.bf16.mxu0 0
    %617 = vmatpush2.bf16.msra.mxu0 0
    %618 = vmatprep.mubr.bf16.mxu0 0
    %619 = vmatmul.mubr.bf16.gmra.mxu0 %v584
    %v620 = vpop.f32.mrf.mxu0
    %v621 = vadd.f32 %v209, %v620
    %v622 = vpop.f32.mrf.mxu0
    %v623 = vadd.f32 %v213, %v622
    %v624 = vpop.f32.mrf.mxu0
    %v625 = vpop.f32.mrf.mxu0
    %626 = vdwg.mxu0
    %627 = vmatprep.subr.bf16.mxu0 0
    %628 = vmatpush1.bf16.msra.mxu0 0
    %629 = vmatprep.subr.bf16.mxu0 0
    %630 = vmatpush1.bf16.msra.mxu0 0
    %631 = vmatprep.subr.bf16.mxu0 0
    %632 = vmatpush1.bf16.msra.mxu0 0
    %633 = vmatprep.subr.bf16.mxu0 0
    %634 = vmatpush1.bf16.msra.mxu0 0
    %635 = vmatprep.subr.bf16.mxu0 0
    %636 = vmatpush1.bf16.msra.mxu0 0
    %637 = vmatprep.subr.bf16.mxu0 0
    %638 = vmatpush1.bf16.msra.mxu0 0
    %639 = vmatprep.subr.bf16.mxu0 %v511
    %640 = vmatpush1.bf16.msra.mxu0 %v510
    %641 = vmatprep.subr.bf16.mxu0 %v486
    %642 = vmatpush1.bf16.msra.mxu0 %v485
    %643 = vmatprep.subr.bf16.mxu0 0
    %644 = vmatpush2.bf16.msra.mxu0 0
    %645 = vmatprep.subr.bf16.mxu0 0
    %646 = vmatpush2.bf16.msra.mxu0 0
    %647 = vmatprep.subr.bf16.mxu0 0
    %648 = vmatpush2.bf16.msra.mxu0 0
    %649 = vmatprep.subr.bf16.mxu0 0
    %650 = vmatpush2.bf16.msra.mxu0 0
    %651 = vmatprep.subr.bf16.mxu0 0
    %652 = vmatpush2.bf16.msra.mxu0 0
    %653 = vmatprep.subr.bf16.mxu0 0
    %654 = vmatpush2.bf16.msra.mxu0 0
    %655 = vmatprep.subr.bf16.mxu0 0
    %656 = vmatpush2.bf16.msra.mxu0 0
    %657 = vmatprep.subr.bf16.mxu0 0
    %658 = vmatpush2.bf16.msra.mxu0 0
    %659 = vmatprep.mubr.bf16.mxu0 0
    %660 = vmatmul.mubr.bf16.gmra.mxu0 %v584
    %v661 = vpop.f32.mrf.mxu0
    %v662 = vadd.f32 %v217, %v661
    %v663 = vpop.f32.mrf.mxu0
    %v664 = vadd.f32 %v221, %v663
    %v665 = vpop.f32.mrf.mxu0
    %v666 = vpop.f32.mrf.mxu0
    %667 = vdwg.mxu0
    %668 = vmatprep.subr.bf16.mxu0 0
    %669 = vmatpush1.bf16.msra.mxu0 0
    %670 = vmatprep.subr.bf16.mxu0 0
    %671 = vmatpush1.bf16.msra.mxu0 0
    %672 = vmatprep.subr.bf16.mxu0 0
    %673 = vmatpush1.bf16.msra.mxu0 0
    %674 = vmatprep.subr.bf16.mxu0 0
    %675 = vmatpush1.bf16.msra.mxu0 0
    %676 = vmatprep.subr.bf16.mxu0 0
    %677 = vmatpush1.bf16.msra.mxu0 0
    %678 = vmatprep.subr.bf16.mxu0 0
    %679 = vmatpush1.bf16.msra.mxu0 0
    %680 = vmatprep.subr.bf16.mxu0 %v513
    %681 = vmatpush1.bf16.msra.mxu0 %v512
    %682 = vmatprep.subr.bf16.mxu0 %v488
    %683 = vmatpush1.bf16.msra.mxu0 %v487
    %684 = vmatprep.subr.bf16.mxu0 0
    %685 = vmatpush2.bf16.msra.mxu0 0
    %686 = vmatprep.subr.bf16.mxu0 0
    %687 = vmatpush2.bf16.msra.mxu0 0
    %688 = vmatprep.subr.bf16.mxu0 0
    %689 = vmatpush2.bf16.msra.mxu0 0
    %690 = vmatprep.subr.bf16.mxu0 0
    %691 = vmatpush2.bf16.msra.mxu0 0
    %692 = vmatprep.subr.bf16.mxu0 0
    %693 = vmatpush2.bf16.msra.mxu0 0
    %694 = vmatprep.subr.bf16.mxu0 0
    %695 = vmatpush2.bf16.msra.mxu0 0
    %696 = vmatprep.subr.bf16.mxu0 0
    %697 = vmatpush2.bf16.msra.mxu0 0
    %698 = vmatprep.subr.bf16.mxu0 0
    %699 = vmatpush2.bf16.msra.mxu0 0
    %700 = vmatprep.mubr.bf16.mxu0 0
    %701 = vmatmul.mubr.bf16.gmra.mxu0 %v584
    %v702 = vpop.f32.mrf.mxu0
    %v703 = vadd.f32 %v225, %v702
    %v704 = vpop.f32.mrf.mxu0
    %v705 = vadd.f32 %v229, %v704
    %v706 = vpop.f32.mrf.mxu0
    %v707 = vpop.f32.mrf.mxu0
    %708 = vdwg.mxu0
    %709 = vmatprep.subr.bf16.mxu0 0
    %710 = vmatpush1.bf16.msra.mxu0 0
    %711 = vmatprep.subr.bf16.mxu0 0
    %712 = vmatpush1.bf16.msra.mxu0 0
    %713 = vmatprep.subr.bf16.mxu0 0
    %714 = vmatpush1.bf16.msra.mxu0 0
    %715 = vmatprep.subr.bf16.mxu0 0
    %716 = vmatpush1.bf16.msra.mxu0 0
    %717 = vmatprep.subr.bf16.mxu0 0
    %718 = vmatpush1.bf16.msra.mxu0 0
    %719 = vmatprep.subr.bf16.mxu0 0
    %720 = vmatpush1.bf16.msra.mxu0 0
    %721 = vmatprep.subr.bf16.mxu0 %v515
    %722 = vmatpush1.bf16.msra.mxu0 %v514
    %723 = vmatprep.subr.bf16.mxu0 %v490
    %724 = vmatpush1.bf16.msra.mxu0 %v489
    %725 = vmatprep.subr.bf16.mxu0 0
    %726 = vmatpush2.bf16.msra.mxu0 0
    %727 = vmatprep.subr.bf16.mxu0 0
    %728 = vmatpush2.bf16.msra.mxu0 0
    %729 = vmatprep.subr.bf16.mxu0 0
    %730 = vmatpush2.bf16.msra.mxu0 0
    %731 = vmatprep.subr.bf16.mxu0 0
    %732 = vmatpush2.bf16.msra.mxu0 0
    %733 = vmatprep.subr.bf16.mxu0 0
    %734 = vmatpush2.bf16.msra.mxu0 0
    %735 = vmatprep.subr.bf16.mxu0 0
    %736 = vmatpush2.bf16.msra.mxu0 0
    %737 = vmatprep.subr.bf16.mxu0 0
    %738 = vmatpush2.bf16.msra.mxu0 0
    %739 = vmatprep.subr.bf16.mxu0 0
    %740 = vmatpush2.bf16.msra.mxu0 0
    %741 = vmatprep.mubr.bf16.mxu0 0
    %742 = vmatmul.mubr.bf16.gmra.mxu0 %v584
    %v743 = vpop.f32.mrf.mxu0
    %v744 = vadd.f32 %v233, %v743
    %v745 = vpop.f32.mrf.mxu0
    %v746 = vadd.f32 %v237, %v745
    %v747 = vpop.f32.mrf.mxu0
    %v748 = vpop.f32.mrf.mxu0
    %749 = vdwg.mxu0
    %750 = vmatprep.subr.bf16.mxu0 0
    %751 = vmatpush1.bf16.msra.mxu0 0
    %752 = vmatprep.subr.bf16.mxu0 0
    %753 = vmatpush1.bf16.msra.mxu0 0
    %754 = vmatprep.subr.bf16.mxu0 0
    %755 = vmatpush1.bf16.msra.mxu0 0
    %756 = vmatprep.subr.bf16.mxu0 0
    %757 = vmatpush1.bf16.msra.mxu0 0
    %758 = vmatprep.subr.bf16.mxu0 0
    %759 = vmatpush1.bf16.msra.mxu0 0
    %760 = vmatprep.subr.bf16.mxu0 0
    %761 = vmatpush1.bf16.msra.mxu0 0
    %762 = vmatprep.subr.bf16.mxu0 %v517
    %763 = vmatpush1.bf16.msra.mxu0 %v516
    %764 = vmatprep.subr.bf16.mxu0 %v492
    %765 = vmatpush1.bf16.msra.mxu0 %v491
    %766 = vmatprep.subr.bf16.mxu0 0
    %767 = vmatpush2.bf16.msra.mxu0 0
    %768 = vmatprep.subr.bf16.mxu0 0
    %769 = vmatpush2.bf16.msra.mxu0 0
    %770 = vmatprep.subr.bf16.mxu0 0
    %771 = vmatpush2.bf16.msra.mxu0 0
    %772 = vmatprep.subr.bf16.mxu0 0
    %773 = vmatpush2.bf16.msra.mxu0 0
    %774 = vmatprep.subr.bf16.mxu0 0
    %775 = vmatpush2.bf16.msra.mxu0 0
    %776 = vmatprep.subr.bf16.mxu0 0
    %777 = vmatpush2.bf16.msra.mxu0 0
    %778 = vmatprep.subr.bf16.mxu0 0
    %779 = vmatpush2.bf16.msra.mxu0 0
    %780 = vmatprep.subr.bf16.mxu0 0
    %781 = vmatpush2.bf16.msra.mxu0 0
    %782 = vmatprep.mubr.bf16.mxu0 0
    %783 = vmatmul.mubr.bf16.gmra.mxu0 %v584
    %v784 = vpop.f32.mrf.mxu0
    %v785 = vadd.f32 %v241, %v784
    %v786 = vpop.f32.mrf.mxu0
    %v787 = vadd.f32 %v245, %v786
    %v788 = vpop.f32.mrf.mxu0
    %v789 = vpop.f32.mrf.mxu0
    %790 = vdwg.mxu0
    %791 = vmatprep.subr.bf16.mxu0 0
    %792 = vmatpush1.bf16.msra.mxu0 0
    %793 = vmatprep.subr.bf16.mxu0 0
    %794 = vmatpush1.bf16.msra.mxu0 0
    %795 = vmatprep.subr.bf16.mxu0 0
    %796 = vmatpush1.bf16.msra.mxu0 0
    %797 = vmatprep.subr.bf16.mxu0 0
    %798 = vmatpush1.bf16.msra.mxu0 0
    %799 = vmatprep.subr.bf16.mxu0 0
    %800 = vmatpush1.bf16.msra.mxu0 0
    %801 = vmatprep.subr.bf16.mxu0 0
    %802 = vmatpush1.bf16.msra.mxu0 0
    %803 = vmatprep.subr.bf16.mxu0 %v519
    %804 = vmatpush1.bf16.msra.mxu0 %v518
    %805 = vmatprep.subr.bf16.mxu0 %v494
    %806 = vmatpush1.bf16.msra.mxu0 %v493
    %807 = vmatprep.subr.bf16.mxu0 0
    %808 = vmatpush2.bf16.msra.mxu0 0
    %809 = vmatprep.subr.bf16.mxu0 0
    %810 = vmatpush2.bf16.msra.mxu0 0
    %811 = vmatprep.subr.bf16.mxu0 0
    %812 = vmatpush2.bf16.msra.mxu0 0
    %813 = vmatprep.subr.bf16.mxu0 0
    %814 = vmatpush2.bf16.msra.mxu0 0
    %815 = vmatprep.subr.bf16.mxu0 0
    %816 = vmatpush2.bf16.msra.mxu0 0
    %817 = vmatprep.subr.bf16.mxu0 0
    %818 = vmatpush2.bf16.msra.mxu0 0
    %819 = vmatprep.subr.bf16.mxu0 0
    %820 = vmatpush2.bf16.msra.mxu0 0
    %821 = vmatprep.subr.bf16.mxu0 0
    %822 = vmatpush2.bf16.msra.mxu0 0
    %823 = vmatprep.mubr.bf16.mxu0 0
    %824 = vmatmul.mubr.bf16.gmra.mxu0 %v584
    %v825 = vpop.f32.mrf.mxu0
    %v826 = vadd.f32 %v249, %v825
    %v827 = vpop.f32.mrf.mxu0
    %v828 = vadd.f32 %v253, %v827
    %v829 = vpop.f32.mrf.mxu0
    %v830 = vpop.f32.mrf.mxu0
    %831 = vdwg.mxu0
    %832 = vmatprep.subr.bf16.mxu0 0
    %833 = vmatpush1.bf16.msra.mxu0 0
    %834 = vmatprep.subr.bf16.mxu0 0
    %835 = vmatpush1.bf16.msra.mxu0 0
    %836 = vmatprep.subr.bf16.mxu0 0
    %837 = vmatpush1.bf16.msra.mxu0 0
    %838 = vmatprep.subr.bf16.mxu0 0
    %839 = vmatpush1.bf16.msra.mxu0 0
    %840 = vmatprep.subr.bf16.mxu0 0
    %841 = vmatpush1.bf16.msra.mxu0 0
    %842 = vmatprep.subr.bf16.mxu0 0
    %843 = vmatpush1.bf16.msra.mxu0 0
    %844 = vmatprep.subr.bf16.mxu0 %v521
    %845 = vmatpush1.bf16.msra.mxu0 %v520
    %846 = vmatprep.subr.bf16.mxu0 %v496
    %847 = vmatpush1.bf16.msra.mxu0 %v495
    %848 = vmatprep.subr.bf16.mxu0 0
    %849 = vmatpush2.bf16.msra.mxu0 0
    %850 = vmatprep.subr.bf16.mxu0 0
    %851 = vmatpush2.bf16.msra.mxu0 0
    %852 = vmatprep.subr.bf16.mxu0 0
    %853 = vmatpush2.bf16.msra.mxu0 0
    %854 = vmatprep.subr.bf16.mxu0 0
    %855 = vmatpush2.bf16.msra.mxu0 0
    %856 = vmatprep.subr.bf16.mxu0 0
    %857 = vmatpush2.bf16.msra.mxu0 0
    %858 = vmatprep.subr.bf16.mxu0 0
    %859 = vmatpush2.bf16.msra.mxu0 0
    %860 = vmatprep.subr.bf16.mxu0 0
    %861 = vmatpush2.bf16.msra.mxu0 0
    %862 = vmatprep.subr.bf16.mxu0 0
    %863 = vmatpush2.bf16.msra.mxu0 0
    %864 = vmatprep.mubr.bf16.mxu0 0
    %865 = vmatmul.mubr.bf16.gmra.mxu0 %v584
    %v866 = vpop.f32.mrf.mxu0
    %v867 = vadd.f32 %v257, %v866
    %v868 = vpop.f32.mrf.mxu0
    %v869 = vadd.f32 %v261, %v868
    %v870 = vpop.f32.mrf.mxu0
    %v871 = vpop.f32.mrf.mxu0
    %872 = vdwg.mxu0
    %873 = vmatprep.subr.bf16.mxu0 0
    %874 = vmatpush1.bf16.msra.mxu0 0
    %875 = vmatprep.subr.bf16.mxu0 0
    %876 = vmatpush1.bf16.msra.mxu0 0
    %877 = vmatprep.subr.bf16.mxu0 0
    %878 = vmatpush1.bf16.msra.mxu0 0
    %879 = vmatprep.subr.bf16.mxu0 0
    %880 = vmatpush1.bf16.msra.mxu0 0
    %881 = vmatprep.subr.bf16.mxu0 0
    %882 = vmatpush1.bf16.msra.mxu0 0
    %883 = vmatprep.subr.bf16.mxu0 0
    %884 = vmatpush1.bf16.msra.mxu0 0
    %885 = vmatprep.subr.bf16.mxu0 %v523
    %886 = vmatpush1.bf16.msra.mxu0 %v522
    %887 = vmatprep.subr.bf16.mxu0 %v498
    %888 = vmatpush1.bf16.msra.mxu0 %v497
    %889 = vmatprep.subr.bf16.mxu0 0
    %890 = vmatpush2.bf16.msra.mxu0 0
    %891 = vmatprep.subr.bf16.mxu0 0
    %892 = vmatpush2.bf16.msra.mxu0 0
    %893 = vmatprep.subr.bf16.mxu0 0
    %894 = vmatpush2.bf16.msra.mxu0 0
    %895 = vmatprep.subr.bf16.mxu0 0
    %896 = vmatpush2.bf16.msra.mxu0 0
    %897 = vmatprep.subr.bf16.mxu0 0
    %898 = vmatpush2.bf16.msra.mxu0 0
    %899 = vmatprep.subr.bf16.mxu0 0
    %900 = vmatpush2.bf16.msra.mxu0 0
    %901 = vmatprep.subr.bf16.mxu0 0
    %902 = vmatpush2.bf16.msra.mxu0 0
    %903 = vmatprep.subr.bf16.mxu0 0
    %904 = vmatpush2.bf16.msra.mxu0 0
    %905 = vmatprep.mubr.bf16.mxu0 0
    %906 = vmatmul.mubr.bf16.gmra.mxu0 %v584
    %v907 = vpop.f32.mrf.mxu0
    %v908 = vadd.f32 %v265, %v907
    %v909 = vpop.f32.mrf.mxu0
    %v910 = vadd.f32 %v269, %v909
    %v911 = vpop.f32.mrf.mxu0
    %v912 = vpop.f32.mrf.mxu0
    %913 = vdwg.mxu0
    %914 = vmatprep.subr.bf16.mxu0 0
    %915 = vmatpush1.bf16.msra.mxu0 0
    %916 = vmatprep.subr.bf16.mxu0 0
    %917 = vmatpush1.bf16.msra.mxu0 0
    %918 = vmatprep.subr.bf16.mxu0 0
    %919 = vmatpush1.bf16.msra.mxu0 0
    %920 = vmatprep.subr.bf16.mxu0 0
    %921 = vmatpush1.bf16.msra.mxu0 0
    %922 = vmatprep.subr.bf16.mxu0 0
    %923 = vmatpush1.bf16.msra.mxu0 0
    %924 = vmatprep.subr.bf16.mxu0 0
    %925 = vmatpush1.bf16.msra.mxu0 0
    %926 = vmatprep.subr.bf16.mxu0 %v525
    %927 = vmatpush1.bf16.msra.mxu0 %v524
    %928 = vmatprep.subr.bf16.mxu0 %v500
    %929 = vmatpush1.bf16.msra.mxu0 %v499
    %930 = vmatprep.subr.bf16.mxu0 0
    %931 = vmatpush2.bf16.msra.mxu0 0
    %932 = vmatprep.subr.bf16.mxu0 0
    %933 = vmatpush2.bf16.msra.mxu0 0
    %934 = vmatprep.subr.bf16.mxu0 0
    %935 = vmatpush2.bf16.msra.mxu0 0
    %936 = vmatprep.subr.bf16.mxu0 0
    %937 = vmatpush2.bf16.msra.mxu0 0
    %938 = vmatprep.subr.bf16.mxu0 0
    %939 = vmatpush2.bf16.msra.mxu0 0
    %940 = vmatprep.subr.bf16.mxu0 0
    %941 = vmatpush2.bf16.msra.mxu0 0
    %942 = vmatprep.subr.bf16.mxu0 0
    %943 = vmatpush2.bf16.msra.mxu0 0
    %944 = vmatprep.subr.bf16.mxu0 0
    %945 = vmatpush2.bf16.msra.mxu0 0
    %946 = vmatprep.mubr.bf16.mxu0 0
    %947 = vmatmul.mubr.bf16.gmra.mxu0 %v584
    %v948 = vpop.f32.mrf.mxu0
    %v949 = vadd.f32 %v273, %v948
    %v950 = vpop.f32.mrf.mxu0
    %v951 = vadd.f32 %v277, %v950
    %v952 = vpop.f32.mrf.mxu0
    %v953 = vpop.f32.mrf.mxu0
    %954 = vdwg.mxu0
    %955 = vmatprep.subr.bf16.mxu0 0
    %956 = vmatpush1.bf16.msra.mxu0 0
    %957 = vmatprep.subr.bf16.mxu0 0
    %958 = vmatpush1.bf16.msra.mxu0 0
    %959 = vmatprep.subr.bf16.mxu0 0
    %960 = vmatpush1.bf16.msra.mxu0 0
    %961 = vmatprep.subr.bf16.mxu0 0
    %962 = vmatpush1.bf16.msra.mxu0 0
    %963 = vmatprep.subr.bf16.mxu0 0
    %964 = vmatpush1.bf16.msra.mxu0 0
    %965 = vmatprep.subr.bf16.mxu0 0
    %966 = vmatpush1.bf16.msra.mxu0 0
    %967 = vmatprep.subr.bf16.mxu0 %v527
    %968 = vmatpush1.bf16.msra.mxu0 %v526
    %969 = vmatprep.subr.bf16.mxu0 %v502
    %970 = vmatpush1.bf16.msra.mxu0 %v501
    %971 = vmatprep.subr.bf16.mxu0 0
    %972 = vmatpush2.bf16.msra.mxu0 0
    %973 = vmatprep.subr.bf16.mxu0 0
    %974 = vmatpush2.bf16.msra.mxu0 0
    %975 = vmatprep.subr.bf16.mxu0 0
    %976 = vmatpush2.bf16.msra.mxu0 0
    %977 = vmatprep.subr.bf16.mxu0 0
    %978 = vmatpush2.bf16.msra.mxu0 0
    %979 = vmatprep.subr.bf16.mxu0 0
    %980 = vmatpush2.bf16.msra.mxu0 0
    %981 = vmatprep.subr.bf16.mxu0 0
    %982 = vmatpush2.bf16.msra.mxu0 0
    %983 = vmatprep.subr.bf16.mxu0 0
    %984 = vmatpush2.bf16.msra.mxu0 0
    %985 = vmatprep.subr.bf16.mxu0 0
    %986 = vmatpush2.bf16.msra.mxu0 0
    %987 = vmatprep.mubr.bf16.mxu0 0
    %988 = vmatmul.mubr.bf16.gmra.mxu0 %v584
    %v989 = vpop.f32.mrf.mxu0
    %v990 = vadd.f32 %v281, %v989
    %v991 = vpop.f32.mrf.mxu0
    %v992 = vadd.f32 %v285, %v991
    %v993 = vpop.f32.mrf.mxu0
    %v994 = vpop.f32.mrf.mxu0
    %995 = vdwg.mxu0
    %996 = vmatprep.subr.bf16.mxu0 0
    %997 = vmatpush1.bf16.msra.mxu0 0
    %998 = vmatprep.subr.bf16.mxu0 0
    %999 = vmatpush1.bf16.msra.mxu0 0
    %1000 = vmatprep.subr.bf16.mxu0 0
    %1001 = vmatpush1.bf16.msra.mxu0 0
    %1002 = vmatprep.subr.bf16.mxu0 0
    %1003 = vmatpush1.bf16.msra.mxu0 0
    %1004 = vmatprep.subr.bf16.mxu0 0
    %1005 = vmatpush1.bf16.msra.mxu0 0
    %1006 = vmatprep.subr.bf16.mxu0 0
    %1007 = vmatpush1.bf16.msra.mxu0 0
    %1008 = vmatprep.subr.bf16.mxu0 %v529
    %1009 = vmatpush1.bf16.msra.mxu0 %v528
    %1010 = vmatprep.subr.bf16.mxu0 %v504
    %1011 = vmatpush1.bf16.msra.mxu0 %v503
    %1012 = vmatprep.subr.bf16.mxu0 0
    %1013 = vmatpush2.bf16.msra.mxu0 0
    %1014 = vmatprep.subr.bf16.mxu0 0
    %1015 = vmatpush2.bf16.msra.mxu0 0
    %1016 = vmatprep.subr.bf16.mxu0 0
    %1017 = vmatpush2.bf16.msra.mxu0 0
    %1018 = vmatprep.subr.bf16.mxu0 0
    %1019 = vmatpush2.bf16.msra.mxu0 0
    %1020 = vmatprep.subr.bf16.mxu0 0
    %1021 = vmatpush2.bf16.msra.mxu0 0
    %1022 = vmatprep.subr.bf16.mxu0 0
    %1023 = vmatpush2.bf16.msra.mxu0 0
    %1024 = vmatprep.subr.bf16.mxu0 0
    %1025 = vmatpush2.bf16.msra.mxu0 0
    %1026 = vmatprep.subr.bf16.mxu0 0
    %1027 = vmatpush2.bf16.msra.mxu0 0
    %1028 = vmatprep.mubr.bf16.mxu0 0
    %1029 = vmatmul.mubr.bf16.gmra.mxu0 %v584
    %v1030 = vpop.f32.mrf.mxu0
    %v1031 = vadd.f32 %v289, %v1030
    %v1032 = vpop.f32.mrf.mxu0
    %v1033 = vadd.f32 %v293, %v1032
    %v1034 = vpop.f32.mrf.mxu0
    %v1035 = vpop.f32.mrf.mxu0
    %1036 = vdwg.mxu0
    %1037 = vmatprep.subr.bf16.mxu0 0
    %1038 = vmatpush1.bf16.msra.mxu0 0
    %1039 = vmatprep.subr.bf16.mxu0 0
    %1040 = vmatpush1.bf16.msra.mxu0 0
    %1041 = vmatprep.subr.bf16.mxu0 0
    %1042 = vmatpush1.bf16.msra.mxu0 0
    %1043 = vmatprep.subr.bf16.mxu0 0
    %1044 = vmatpush1.bf16.msra.mxu0 0
    %1045 = vmatprep.subr.bf16.mxu0 0
    %1046 = vmatpush1.bf16.msra.mxu0 0
    %1047 = vmatprep.subr.bf16.mxu0 0
    %1048 = vmatpush1.bf16.msra.mxu0 0
    %1049 = vmatprep.subr.bf16.mxu0 %v531
    %1050 = vmatpush1.bf16.msra.mxu0 %v530
    %1051 = vmatprep.subr.bf16.mxu0 %v506
    %1052 = vmatpush1.bf16.msra.mxu0 %v505
    %1053 = vmatprep.subr.bf16.mxu0 0
    %1054 = vmatpush2.bf16.msra.mxu0 0
    %1055 = vmatprep.subr.bf16.mxu0 0
    %1056 = vmatpush2.bf16.msra.mxu0 0
    %1057 = vmatprep.subr.bf16.mxu0 0
    %1058 = vmatpush2.bf16.msra.mxu0 0
    %1059 = vmatprep.subr.bf16.mxu0 0
    %1060 = vmatpush2.bf16.msra.mxu0 0
    %1061 = vmatprep.subr.bf16.mxu0 0
    %1062 = vmatpush2.bf16.msra.mxu0 0
    %1063 = vmatprep.subr.bf16.mxu0 0
    %1064 = vmatpush2.bf16.msra.mxu0 0
    %1065 = vmatprep.subr.bf16.mxu0 0
    %1066 = vmatpush2.bf16.msra.mxu0 0
    %1067 = vmatprep.subr.bf16.mxu0 0
    %1068 = vmatpush2.bf16.msra.mxu0 0
    %1069 = vmatprep.mubr.bf16.mxu0 0
    %1070 = vmatmul.mubr.bf16.gmra.mxu0 %v584
    %v1071 = vpop.f32.mrf.mxu0
    %v1072 = vadd.f32 %v297, %v1071
    %v1073 = vpop.f32.mrf.mxu0
    %v1074 = vadd.f32 %v301, %v1073
    %v1075 = vpop.f32.mrf.mxu0
    %v1076 = vpop.f32.mrf.mxu0
    %1077 = vdwg.mxu0
    %1078 = vmatprep.subr.bf16.mxu0 0
    %1079 = vmatpush1.bf16.msra.mxu0 0
    %1080 = vmatprep.subr.bf16.mxu0 0
    %1081 = vmatpush1.bf16.msra.mxu0 0
    %1082 = vmatprep.subr.bf16.mxu0 0
    %1083 = vmatpush1.bf16.msra.mxu0 0
    %1084 = vmatprep.subr.bf16.mxu0 0
    %1085 = vmatpush1.bf16.msra.mxu0 0
    %1086 = vmatprep.subr.bf16.mxu0 0
    %1087 = vmatpush1.bf16.msra.mxu0 0
    %1088 = vmatprep.subr.bf16.mxu0 0
    %1089 = vmatpush1.bf16.msra.mxu0 0
    %1090 = vmatprep.subr.bf16.mxu0 0
    %1091 = vmatpush1.bf16.msra.mxu0 %v532
    %1092 = vmatprep.subr.bf16.mxu0 0
    %1093 = vmatpush1.bf16.msra.mxu0 %v507
    %1094 = vmatprep.subr.bf16.mxu0 0
    %1095 = vmatpush2.bf16.msra.mxu0 0
    %1096 = vmatprep.subr.bf16.mxu0 0
    %1097 = vmatpush2.bf16.msra.mxu0 0
    %1098 = vmatprep.subr.bf16.mxu0 0
    %1099 = vmatpush2.bf16.msra.mxu0 0
    %1100 = vmatprep.subr.bf16.mxu0 0
    %1101 = vmatpush2.bf16.msra.mxu0 0
    %1102 = vmatprep.subr.bf16.mxu0 0
    %1103 = vmatpush2.bf16.msra.mxu0 0
    %1104 = vmatprep.subr.bf16.mxu0 0
    %1105 = vmatpush2.bf16.msra.mxu0 0
    %1106 = vmatprep.subr.bf16.mxu0 0
    %1107 = vmatpush2.bf16.msra.mxu0 0
    %1108 = vmatprep.subr.bf16.mxu0 0
    %1109 = vmatpush2.bf16.msra.mxu0 0
    %1110 = vmatprep.mubr.bf16.mxu0 0
    %1111 = vmatmul.mubr.bf16.gmra.mxu0 %v584
    %v1112 = vpop.f32.mrf.mxu0
    %v1113 = vadd.f32 %v305, %v1112
    %v1114 = vpop.f32.mrf.mxu0
    %v1115 = vpop.f32.mrf.mxu0
    %v1116 = vpop.f32.mrf.mxu0
    %1117 = vdwg.mxu0
    %v1143 = vcombine.low %v621, %v623
    %v1144 = vcombine.low %v662, %v664
    %v1146 = vunpack.c.l.s4 1983009808
    %v1147 = vunpack.c.0.s8 %v1146
    %v1148 = vlaneseq
    %v1149 = vshrl.u32 %v1148, 7
    %v1150 = vsub.s32 %v1147, %v1149
    %v1151 = vrot.slane %v1143, %v1150
    %v1153 = vunpack.c.l.s4 1983009808
    %v1154 = vunpack.c.0.s8 %v1153
    %v1155 = vlaneseq
    %v1156 = vshrl.u32 %v1155, 7
    %v1157 = vsub.s32 %v1154, %v1156
    %v1158 = vrot.slane %v1144, %v1157
    %v1159 = vcombine.low %v1151, %v1158
    %v1160 = vcombine.low %v703, %v705
    %v1161 = vcombine.low %v744, %v746
    %v1163 = vunpack.c.l.s4 1983009808
    %v1164 = vunpack.c.0.s8 %v1163
    %v1165 = vlaneseq
    %v1166 = vshrl.u32 %v1165, 7
    %v1167 = vsub.s32 %v1164, %v1166
    %v1168 = vrot.slane %v1160, %v1167
    %v1170 = vunpack.c.l.s4 1983009808
    %v1171 = vunpack.c.0.s8 %v1170
    %v1172 = vlaneseq
    %v1173 = vshrl.u32 %v1172, 7
    %v1174 = vsub.s32 %v1171, %v1173
    %v1175 = vrot.slane %v1161, %v1174
    %v1176 = vcombine.low %v1168, %v1175
    %v1177 = vcombine.low %v785, %v787
    %v1178 = vcombine.low %v826, %v828
    %v1180 = vunpack.c.l.s4 1983009808
    %v1181 = vunpack.c.0.s8 %v1180
    %v1182 = vlaneseq
    %v1183 = vshrl.u32 %v1182, 7
    %v1184 = vsub.s32 %v1181, %v1183
    %v1185 = vrot.slane %v1177, %v1184
    %v1187 = vunpack.c.l.s4 1983009808
    %v1188 = vunpack.c.0.s8 %v1187
    %v1189 = vlaneseq
    %v1190 = vshrl.u32 %v1189, 7
    %v1191 = vsub.s32 %v1188, %v1190
    %v1192 = vrot.slane %v1178, %v1191
    %v1193 = vcombine.low %v1185, %v1192
    %v1194 = vcombine.low %v867, %v869
    %v1195 = vcombine.low %v908, %v910
    %v1197 = vunpack.c.l.s4 1983009808
    %v1198 = vunpack.c.0.s8 %v1197
    %v1199 = vlaneseq
    %v1200 = vshrl.u32 %v1199, 7
    %v1201 = vsub.s32 %v1198, %v1200
    %v1202 = vrot.slane %v1194, %v1201
    %v1204 = vunpack.c.l.s4 1983009808
    %v1205 = vunpack.c.0.s8 %v1204
    %v1206 = vlaneseq
    %v1207 = vshrl.u32 %v1206, 7
    %v1208 = vsub.s32 %v1205, %v1207
    %v1209 = vrot.slane %v1195, %v1208
    %v1210 = vcombine.low %v1202, %v1209
    %v1211 = vcombine.low %v949, %v951
    %v1212 = vcombine.low %v990, %v992
    %v1214 = vunpack.c.l.s4 1983009808
    %v1215 = vunpack.c.0.s8 %v1214
    %v1216 = vlaneseq
    %v1217 = vshrl.u32 %v1216, 7
    %v1218 = vsub.s32 %v1215, %v1217
    %v1219 = vrot.slane %v1211, %v1218
    %v1221 = vunpack.c.l.s4 1983009808
    %v1222 = vunpack.c.0.s8 %v1221
    %v1223 = vlaneseq
    %v1224 = vshrl.u32 %v1223, 7
    %v1225 = vsub.s32 %v1222, %v1224
    %v1226 = vrot.slane %v1212, %v1225
    %v1227 = vcombine.low %v1219, %v1226
    %v1228 = vcombine.low %v1031, %v1033
    %v1229 = vcombine.low %v1072, %v1074
    %v1231 = vunpack.c.l.s4 1983009808
    %v1232 = vunpack.c.0.s8 %v1231
    %v1233 = vlaneseq
    %v1234 = vshrl.u32 %v1233, 7
    %v1235 = vsub.s32 %v1232, %v1234
    %v1236 = vrot.slane %v1228, %v1235
    %v1238 = vunpack.c.l.s4 1983009808
    %v1239 = vunpack.c.0.s8 %v1238
    %v1240 = vlaneseq
    %v1241 = vshrl.u32 %v1240, 7
    %v1242 = vsub.s32 %v1239, %v1241
    %v1243 = vrot.slane %v1229, %v1242
    %v1244 = vcombine.low %v1236, %v1243
    %v1246 = vunpack.c.l.s4 1983009808
    %v1247 = vunpack.c.0.s8 %v1246
    %v1248 = vlaneseq
    %v1249 = vshrl.u32 %v1248, 7
    %v1250 = vsub.s32 %v1247, %v1249
    %v1251 = vrot.slane %v1113, %v1250
    %1259 = vst [vmem:[#allocation10] sm:$0xff] %v1159
    %1260 = vst [vmem:[#allocation10 + $0x8] sm:$0xff] %v1176
    %1261 = vst [vmem:[#allocation10 + $0x10] sm:$0xff] %v1193
    %1262 = vst [vmem:[#allocation10 + $0x18] sm:$0xff] %v1210
    %1263 = vst [vmem:[#allocation10 + $0x20] sm:$0xff] %v1227
    %1264 = vst [vmem:[#allocation10 + $0x28] sm:$0xff] %v1244
    %1265 = vst [vmem:[#allocation10 + $0x30] sm:$0x3] %v1251
    %v1266 = vlaneseq
    %v1267 = vand.u32 %v1266, 127
    %v1268 = vadd.s32 %v1267, 128
    %v1269 = vadd.s32 %v1267, 256
    %v1270 = vadd.s32 %v1267, 384
    %v1271 = vadd.s32 %v1267, 512
    %v1272 = vadd.s32 %v1267, 640
    %v1273 = vadd.s32 %v1267, 768
    %v1274 = vadd.s32 %v1267, 896
    %v1275 = vadd.s32 %v1267, 1024
    %v1276 = vadd.s32 %v1267, 1152
    %v1277 = vadd.s32 %v1267, 1280
    %v1278 = vadd.s32 %v1267, 1408
    %v1279 = vadd.s32 %v1267, 1536
    %v1280 = vadd.s32 %v1267, 1664
    %v1281 = vadd.s32 %v1267, 1792
    %v1282 = vadd.s32 %v1267, 1920
    %v1283 = vadd.s32 %v1267, 2048
    %v1284 = vadd.s32 %v1267, 2176
    %v1285 = vadd.s32 %v1267, 2304
    %v1286 = vadd.s32 %v1267, 2432
    %v1287 = vadd.s32 %v1267, 2560
    %v1288 = vadd.s32 %v1267, 2688
    %v1289 = vadd.s32 %v1267, 2816
    %v1290 = vadd.s32 %v1267, 2944
    %v1291 = vadd.s32 %v1267, 3072
    %vm1292 = vcmask 1041408
    %v1293 = vsel %vm1292, %v621, -inf
    %v1294 = vsel %vm1292, %v623, -inf
    %v1295 = vsel %vm1292, %v662, -inf
    %v1296 = vsel %vm1292, %v664, -inf
    %v1297 = vsel %vm1292, %v703, -inf
    %v1298 = vmax.f32 %v1293, %v1297
    %v1299 = vsel %vm1292, %v705, -inf
    %v1300 = vmax.f32 %v1294, %v1299
    %v1301 = vsel %vm1292, %v744, -inf
    %v1302 = vmax.f32 %v1295, %v1301
    %v1303 = vsel %vm1292, %v746, -inf
    %v1304 = vmax.f32 %v1296, %v1303
    %v1305 = vsel %vm1292, %v785, -inf
    %v1306 = vmax.f32 %v1298, %v1305
    %v1307 = vsel %vm1292, %v787, -inf
    %v1308 = vmax.f32 %v1300, %v1307
    %v1309 = vsel %vm1292, %v826, -inf
    %v1310 = vmax.f32 %v1302, %v1309
    %v1311 = vsel %vm1292, %v828, -inf
    %v1312 = vmax.f32 %v1304, %v1311
    %v1313 = vsel %vm1292, %v867, -inf
    %v1314 = vmax.f32 %v1306, %v1313
    %v1315 = vsel %vm1292, %v869, -inf
    %v1316 = vmax.f32 %v1308, %v1315
    %v1317 = vsel %vm1292, %v908, -inf
    %v1318 = vmax.f32 %v1310, %v1317
    %v1319 = vsel %vm1292, %v910, -inf
    %v1320 = vmax.f32 %v1312, %v1319
    %v1321 = vsel %vm1292, %v949, -inf
    %v1322 = vmax.f32 %v1314, %v1321
    %v1323 = vsel %vm1292, %v951, -inf
    %v1324 = vmax.f32 %v1316, %v1323
    %v1325 = vsel %vm1292, %v990, -inf
    %v1326 = vmax.f32 %v1318, %v1325
    %v1327 = vsel %vm1292, %v992, -inf
    %v1328 = vmax.f32 %v1320, %v1327
    %v1329 = vsel %vm1292, %v1031, -inf
    %v1330 = vmax.f32 %v1322, %v1329
    %v1331 = vsel %vm1292, %v1033, -inf
    %v1332 = vmax.f32 %v1324, %v1331
    %v1333 = vsel %vm1292, %v1072, -inf
    %v1334 = vmax.f32 %v1326, %v1333
    %v1335 = vsel %vm1292, %v1074, -inf
    %v1336 = vmax.f32 %v1328, %v1335
    %v1337 = vsel %vm1292, %v1113, -inf
    %v1338 = vmax.f32 %v1330, %v1337
    %v1339 = vmax.f32 %v1338, %v1332
    %v1340 = vmax.f32 %v1334, %v1336
    %v1341 = vmax.f32 %v1339, %v1340
    %1342 = vmax.xlane.f32.xlu0 %v1341
    %v1343 = vpop.xlane.xlu0 %1342
    %vm1344 = vcmp.eq.f32.partialorder %v621, %v1343
    %vm1345 = vcmp.eq.f32.partialorder %v623, %v1343
    %vm1346 = vcmp.eq.f32.partialorder %v662, %v1343
    %vm1347 = vcmp.eq.f32.partialorder %v664, %v1343
    %vm1348 = vcmp.eq.f32.partialorder %v703, %v1343
    %vm1349 = vcmp.eq.f32.partialorder %v705, %v1343
    %vm1350 = vcmp.eq.f32.partialorder %v744, %v1343
    %vm1351 = vcmp.eq.f32.partialorder %v746, %v1343
    %vm1352 = vcmp.eq.f32.partialorder %v785, %v1343
    %vm1353 = vcmp.eq.f32.partialorder %v787, %v1343
    %vm1354 = vcmp.eq.f32.partialorder %v826, %v1343
    %vm1355 = vcmp.eq.f32.partialorder %v828, %v1343
    %vm1356 = vcmp.eq.f32.partialorder %v867, %v1343
    %vm1357 = vcmp.eq.f32.partialorder %v869, %v1343
    %vm1358 = vcmp.eq.f32.partialorder %v908, %v1343
    %vm1359 = vcmp.eq.f32.partialorder %v910, %v1343
    %vm1360 = vcmp.eq.f32.partialorder %v949, %v1343
    %vm1361 = vcmp.eq.f32.partialorder %v951, %v1343
    %vm1362 = vcmp.eq.f32.partialorder %v990, %v1343
    %vm1363 = vcmp.eq.f32.partialorder %v992, %v1343
    %vm1364 = vcmp.eq.f32.partialorder %v1031, %v1343
    %vm1365 = vcmp.eq.f32.partialorder %v1033, %v1343
    %vm1366 = vcmp.eq.f32.partialorder %v1072, %v1343
    %vm1367 = vcmp.eq.f32.partialorder %v1074, %v1343
    %vm1368 = vcmp.eq.f32.partialorder %v1113, %v1343
    %v1369 = vsel %vm1344, %v1267, 3200
    %v1370 = vsel %vm1345, %v1268, 3200
    %v1371 = vsel %vm1346, %v1269, 3200
    %v1372 = vsel %vm1347, %v1270, 3200
    %v1373 = vsel %vm1348, %v1271, 3200
    %v1374 = vsel %vm1349, %v1272, 3200
    %v1375 = vsel %vm1350, %v1273, 3200
    %v1376 = vsel %vm1351, %v1274, 3200
    %v1377 = vsel %vm1352, %v1275, 3200
    %v1378 = vsel %vm1353, %v1276, 3200
    %v1379 = vsel %vm1354, %v1277, 3200
    %v1380 = vsel %vm1355, %v1278, 3200
    %v1381 = vsel %vm1356, %v1279, 3200
    %v1382 = vsel %vm1357, %v1280, 3200
    %v1383 = vsel %vm1358, %v1281, 3200
    %v1384 = vsel %vm1359, %v1282, 3200
    %v1385 = vsel %vm1360, %v1283, 3200
    %v1386 = vsel %vm1361, %v1284, 3200
    %v1387 = vsel %vm1362, %v1285, 3200
    %v1388 = vsel %vm1363, %v1286, 3200
    %v1389 = vsel %vm1364, %v1287, 3200
    %v1390 = vsel %vm1365, %v1288, 3200
    %v1391 = vsel %vm1366, %v1289, 3200
    %v1392 = vsel %vm1367, %v1290, 3200
    %v1393 = vsel %vm1368, %v1291, 3200
    %v1394 = vsel %vm1292, %v1369, 2147483647
    %v1395 = vsel %vm1292, %v1370, 2147483647
    %v1396 = vsel %vm1292, %v1371, 2147483647
    %v1397 = vsel %vm1292, %v1372, 2147483647
    %v1398 = vsel %vm1292, %v1373, 2147483647
    %vm1399 = vcmp.lt.s32.totalorder %v1394, %v1398
    %v1400 = vsel %vm1399, %v1394, %v1398
    %v1401 = vsel %vm1292, %v1374, 2147483647
    %vm1402 = vcmp.lt.s32.totalorder %v1395, %v1401
    %v1403 = vsel %vm1402, %v1395, %v1401
    %v1404 = vsel %vm1292, %v1375, 2147483647
    %vm1405 = vcmp.lt.s32.totalorder %v1396, %v1404
    %v1406 = vsel %vm1405, %v1396, %v1404
    %v1407 = vsel %vm1292, %v1376, 2147483647
    %vm1408 = vcmp.lt.s32.totalorder %v1397, %v1407
    %v1409 = vsel %vm1408, %v1397, %v1407
    %v1410 = vsel %vm1292, %v1377, 2147483647
    %vm1411 = vcmp.lt.s32.totalorder %v1400, %v1410
    %v1412 = vsel %vm1411, %v1400, %v1410
    %v1413 = vsel %vm1292, %v1378, 2147483647
    %vm1414 = vcmp.lt.s32.totalorder %v1403, %v1413
    %v1415 = vsel %vm1414, %v1403, %v1413
    %v1416 = vsel %vm1292, %v1379, 2147483647
    %vm1417 = vcmp.lt.s32.totalorder %v1406, %v1416
    %v1418 = vsel %vm1417, %v1406, %v1416
    %v1419 = vsel %vm1292, %v1380, 2147483647
    %vm1420 = vcmp.lt.s32.totalorder %v1409, %v1419
    %v1421 = vsel %vm1420, %v1409, %v1419
    %v1422 = vsel %vm1292, %v1381, 2147483647
    %vm1423 = vcmp.lt.s32.totalorder %v1412, %v1422
    %v1424 = vsel %vm1423, %v1412, %v1422
    %v1425 = vsel %vm1292, %v1382, 2147483647
    %vm1426 = vcmp.lt.s32.totalorder %v1415, %v1425
    %v1427 = vsel %vm1426, %v1415, %v1425
    %v1428 = vsel %vm1292, %v1383, 2147483647
    %vm1429 = vcmp.lt.s32.totalorder %v1418, %v1428
    %v1430 = vsel %vm1429, %v1418, %v1428
    %v1431 = vsel %vm1292, %v1384, 2147483647
    %vm1432 = vcmp.lt.s32.totalorder %v1421, %v1431
    %v1433 = vsel %vm1432, %v1421, %v1431
    %v1434 = vsel %vm1292, %v1385, 2147483647
    %vm1435 = vcmp.lt.s32.totalorder %v1424, %v1434
    %v1436 = vsel %vm1435, %v1424, %v1434
    %v1437 = vsel %vm1292, %v1386, 2147483647
    %vm1438 = vcmp.lt.s32.totalorder %v1427, %v1437
    %v1439 = vsel %vm1438, %v1427, %v1437
    %v1440 = vsel %vm1292, %v1387, 2147483647
    %vm1441 = vcmp.lt.s32.totalorder %v1430, %v1440
    %v1442 = vsel %vm1441, %v1430, %v1440
    %v1443 = vsel %vm1292, %v1388, 2147483647
    %vm1444 = vcmp.lt.s32.totalorder %v1433, %v1443
    %v1445 = vsel %vm1444, %v1433, %v1443
    %v1446 = vsel %vm1292, %v1389, 2147483647
    %vm1447 = vcmp.lt.s32.totalorder %v1436, %v1446
    %v1448 = vsel %vm1447, %v1436, %v1446
    %v1449 = vsel %vm1292, %v1390, 2147483647
    %vm1450 = vcmp.lt.s32.totalorder %v1439, %v1449
    %v1451 = vsel %vm1450, %v1439, %v1449
    %v1452 = vsel %vm1292, %v1391, 2147483647
    %vm1453 = vcmp.lt.s32.totalorder %v1442, %v1452
    %v1454 = vsel %vm1453, %v1442, %v1452
    %v1455 = vsel %vm1292, %v1392, 2147483647
    %vm1456 = vcmp.lt.s32.totalorder %v1445, %v1455
    %v1457 = vsel %vm1456, %v1445, %v1455
    %v1458 = vsel %vm1292, %v1393, 2147483647
    %vm1459 = vcmp.lt.s32.totalorder %v1448, %v1458
    %v1460 = vsel %vm1459, %v1448, %v1458
    %vm1461 = vcmp.lt.s32.totalorder %v1460, %v1451
    %v1462 = vsel %vm1461, %v1460, %v1451
    %vm1463 = vcmp.lt.s32.totalorder %v1454, %v1457
    %v1464 = vsel %vm1463, %v1454, %v1457
    %vm1465 = vcmp.lt.s32.totalorder %v1462, %v1464
    %v1466 = vsel %vm1465, %v1462, %v1464
    %v1467 = vand.u32 %v1466, 65535
    %v1468 = vshra.s32 %v1466, 16
    %v1469 = vcvt.s32.f32 %v1467
    %v1470 = vcvt.s32.f32 %v1468
    %1471 = vmin.xlane.f32.xlu0 %v1470
    %v1472 = vpop.xlane.xlu0 %1471
    %vm1473 = vcmp.eq.f32.partialorder %v1470, %v1472
    %v1474 = vsel %vm1473, %v1469, inf
    %1475 = vmin.xlane.f32.xlu0 %v1474
    %v1476 = vpop.xlane.xlu0 %1475
    %v1477 = vcvt.f32.s32 %v1476
    %v1478 = vcvt.f32.s32 %v1472
    %v1479 = vshll.u32 %v1478, 16
    %v1480 = vadd.s32 %v1479, %v1477
    %1481 = vst [vmem:[#allocation11] sm:$0x3] %v1480
    // Predicated region
    $region38: #{tpu_custom_call.1} parent=1 // pred_check
      _
    $region39: #{tpu_custom_call.1} parent=1 // pred_check_branch
      %1483 = sbr.rel (0) target = $region41
    $region40: #{tpu_custom_call.1} parent=1 // pred_region
      %s1485 = ssub.s32 800, 800
      %1486 = vsyncadd [#allocation4], %s1485
      %s1488 = sshll.u32 [#allocation10], 4
      %s1489 = int_to_ptr.vmem [resolvable:$true] %s1488
      %1491 = dma.vmem_to_hbm [thread:$0]  %s1489, 800, %s5, [#allocation4]
    $region41: #{tpu_custom_call.1} parent=1 // pred_fallthru
      _
    // Predicated region
    $region42: #{tpu_custom_call.1} parent=1 // pred_check
      _
    $region43: #{tpu_custom_call.1} parent=1 // pred_check_branch
      %1493 = sbr.rel (0) target = $region45
    $region44: #{tpu_custom_call.1} parent=1 // pred_region
      %s1495 = ssub.s32 32, 32
      %1496 = vsyncadd [#allocation12], %s1495
      %s1498 = sshll.u32 [#allocation11], 4
      %s1499 = int_to_ptr.vmem [resolvable:$true] %s1498
      %1501 = dma.vmem_to_hbm [thread:$0]  %s1499, 32, %s6, [#allocation12]
    $region45: #{tpu_custom_call.1} parent=1 // pred_fallthru
      _
    // Predicated region
    $region46: #{tpu_custom_call.1} parent=1 // pred_check
      _
    $region47: #{tpu_custom_call.1} parent=1 // pred_check_branch
      %1503 = sbr.rel (0) target = $region49
    $region48: #{tpu_custom_call.1} parent=1 // pred_region
      %1504 = dma.done [#allocation4], 800
    $region49: #{tpu_custom_call.1} parent=1 // pred_fallthru
      _
    // Predicated region
    $region50: #{tpu_custom_call.1} parent=1 // pred_check
      _
    $region51: #{tpu_custom_call.1} parent=1 // pred_check_branch
      %1506 = sbr.rel (0) target = $region53
    $region52: #{tpu_custom_call.1} parent=1 // pred_region
      %1507 = dma.done [#allocation12], 32
    $region53: #{tpu_custom_call.1} parent=1 // pred_fallthru
      _
    %1508 = vsyncpa [#allocation3], 1
    %1509 = vsyncpa [#allocation6], 1
    %1510 = vsyncpa [#allocation9], 1
    %1511 = vsyncpa [#allocation4], 1
    %1512 = vsyncpa [#allocation12], 1

</llo_original>
